<compile_context>
chip_gen: v6e
topology: v6e:2x2x1
jax: 0.10.0
libtpu: 0.0.40
codegen_flags: <defaults>
</compile_context>

<pallas_src>
import functools

import jax
import jax.numpy as jnp
from jax.experimental import pallas as pl
from jax.experimental.pallas import tpu as pltpu

_VMEM_LIMIT_BYTES = 32 << 20      # scoped VMEM limit requested (safe on v5e/v6e/v7x)
_FUSED_SLAB_MAX_BYTES = 4 << 20   # (C, HW)*4B slab; x4 (dbl-buffered in+out) ~= 16 MiB
_TARGET_BLOCK_BYTES = 2 << 20     # per-block byte target for the tiled fallback
_MAX_BLOCK_BYTES = 4 << 20        # whole-HW block allowed up to this size


def _gate_from_sum(s, w1t, b1, w2, b2, inv_hw):
    """Squeeze-excite gate from the per-channel spatial sum.

    s:   (C, 1)  f32 spatial sum
    w1t: (C, Cr) f32 (conv1 weight, transposed)   b1: (1, Cr)
    w2:  (C, Cr) f32 (conv2 weight)               b2: (C, 1)
    Pure broadcast-multiply + reductions (VPU/XLU) + sigmoid (EUP); no MXU,
    no transposes of awkward shapes.
    """
    mean = s * inv_hw                                            # (C, 1)
    y1 = jnp.sum(w1t * mean, axis=0, keepdims=True) + b1         # (1, Cr)
    y1 = jnp.maximum(y1, 0.0)
    y2 = jnp.sum(w2 * y1, axis=1, keepdims=True) + b2            # (C, 1)
    return jax.nn.sigmoid(y2)                                    # (C, 1) f32


# ---------------- single-pass fused kernel (slab-resident) -------------------
def _fused_kernel(x_ref, w1t_ref, b1_ref, w2_ref, b2_ref, o_ref, *, inv_hw):
    x = x_ref[0].astype(jnp.float32)                             # (C, HW)
    s = jnp.sum(x, axis=-1, keepdims=True)                       # (C, 1)
    gate = _gate_from_sum(s, w1t_ref[...], b1_ref[...],
                          w2_ref[...], b2_ref[...], inv_hw)      # (C, 1)
    o_ref[0] = (x * gate).astype(o_ref.dtype)


# ---------------- two-pass fallback: tiled sum + fused gate epilogue ---------
def _sum_gate_kernel(x_ref, w1t_ref, b1_ref, w2_ref, b2_ref, gate_ref, acc_ref,
                     *, inv_hw, hw, tile, needs_mask):
    t = pl.program_id(1)

    @pl.when(t == 0)
    def _():
        acc_ref[...] = jnp.zeros_like(acc_ref)

    x = x_ref[0].astype(jnp.float32)                             # (C, T)
    if needs_mask:  # static: only emitted when HW % T != 0
        lane = jax.lax.broadcasted_iota(jnp.int32, x.shape, 1)
        x = jnp.where(t * tile + lane < hw, x, 0.0)
    acc_ref[...] += jnp.sum(x, axis=-1, keepdims=True)

    @pl.when(t == pl.num_programs(1) - 1)
    def _():
        gate_ref[0] = _gate_from_sum(acc_ref[...], w1t_ref[...], b1_ref[...],
                                     w2_ref[...], b2_ref[...], inv_hw)


def _scale_kernel(gate_ref, x_ref, o_ref):
    # (C, T) * (C, 1) -> (C, T), lane-dense stores.
    o_ref[0] = (x_ref[0].astype(jnp.float32) * gate_ref[0]).astype(o_ref.dtype)


def _pick_hw_tile(C, HW):
    """Byte-targeted lane tile (multiple of 128); whole HW if it fits."""
    if C * HW * 4 <= _MAX_BLOCK_BYTES:
        return HW
    t = (_TARGET_BLOCK_BYTES // (C * 4)) // 128 * 128
    return max(128, min(t, HW))


def ca_layer_pallas(x, w1, b1, w2, b2, *,
                    max_fused_slab_bytes=_FUSED_SLAB_MAX_BYTES, hw_tile=None):
    """x: (B, C, H, W). w1: (Cr, C), b1: (Cr,), w2: (C, Cr), b2: (C,)."""
    B, C, H, W = x.shape
    HW = H * W
    Cr = w1.shape[0]
    inv_hw = float(1.0 / HW)

    x_l = x.reshape(B, C, HW)                   # contiguous -> free reshape

    # Weight layouts chosen so the in-kernel MLP is pure broadcast + reduce.
    w1t = jnp.asarray(w1, jnp.float32).T        # (C, Cr)
    b1r = jnp.asarray(b1, jnp.float32).reshape(1, Cr)
    w2f = jnp.asarray(w2, jnp.float32)          # (C, Cr)
    b2c = jnp.asarray(b2, jnp.float32).reshape(C, 1)

    cp1 = pltpu.CompilerParams(dimension_semantics=("parallel",),
                               vmem_limit_bytes=_VMEM_LIMIT_BYTES)

    # ---- fast path: whole (C, HW) slab resident, single fused pass ----------
    if hw_tile is None and C * HW * 4 <= max_fused_slab_bytes:
        out = pl.pallas_call(
            functools.partial(_fused_kernel, inv_hw=inv_hw),
            out_shape=jax.ShapeDtypeStruct((B, C, HW), x.dtype),
            grid_spec=pltpu.PrefetchScalarGridSpec(
                num_scalar_prefetch=0,
                grid=(B,),
                in_specs=[
                    pl.BlockSpec((1, C, HW), lambda b: (b, 0, 0)),
                    pl.BlockSpec((C, Cr), lambda b: (0, 0)),
                    pl.BlockSpec((1, Cr), lambda b: (0, 0)),
                    pl.BlockSpec((C, Cr), lambda b: (0, 0)),
                    pl.BlockSpec((C, 1), lambda b: (0, 0)),
                ],
                out_specs=pl.BlockSpec((1, C, HW), lambda b: (b, 0, 0)),
            ),
            compiler_params=cp1,
        )(x_l, w1t, b1r, w2f, b2c)
        return out.reshape(B, C, H, W)

    # ---- fallback: tiled two-pass (gate fused into pass-1 epilogue) ---------
    T = hw_tile if hw_tile is not None else _pick_hw_tile(C, HW)
    n_t = pl.cdiv(HW, T)
    needs_mask = (HW % T) != 0

    gate = pl.pallas_call(
        functools.partial(_sum_gate_kernel, inv_hw=inv_hw, hw=HW, tile=T,
                          needs_mask=needs_mask),
        out_shape=jax.ShapeDtypeStruct((B, C, 1), jnp.float32),
        grid_spec=pltpu.PrefetchScalarGridSpec(
            num_scalar_prefetch=0,
            grid=(B, n_t),
            in_specs=[
                pl.BlockSpec((1, C, T), lambda b, t: (b, 0, t)),
                pl.BlockSpec((C, Cr), lambda b, t: (0, 0)),
                pl.BlockSpec((1, Cr), lambda b, t: (0, 0)),
                pl.BlockSpec((C, Cr), lambda b, t: (0, 0)),
                pl.BlockSpec((C, 1), lambda b, t: (0, 0)),
            ],
            out_specs=pl.BlockSpec((1, C, 1), lambda b, t: (b, 0, 0)),
            scratch_shapes=[pltpu.VMEM((C, 1), jnp.float32)],
        ),
        compiler_params=pltpu.CompilerParams(
            dimension_semantics=("parallel", "arbitrary"),
            vmem_limit_bytes=_VMEM_LIMIT_BYTES),
    )(x_l, w1t, b1r, w2f, b2c)

    out = pl.pallas_call(
        _scale_kernel,
        out_shape=jax.ShapeDtypeStruct((B, C, HW), x.dtype),
        grid_spec=pltpu.PrefetchScalarGridSpec(
            num_scalar_prefetch=0,
            grid=(B, n_t),
            in_specs=[
                pl.BlockSpec((1, C, 1), lambda b, t: (b, 0, 0)),
                pl.BlockSpec((1, C, T), lambda b, t: (b, 0, t)),
            ],
            out_specs=pl.BlockSpec((1, C, T), lambda b, t: (b, 0, t)),
        ),
        compiler_params=pltpu.CompilerParams(
            dimension_semantics=("parallel", "parallel"),
            vmem_limit_bytes=_VMEM_LIMIT_BYTES),
    )(gate, x_l)
    return out.reshape(B, C, H, W)


def ca_layer_ref(x, w1, b1, w2, b2):
    """Pure-JAX reference matching the PyTorch forward."""
    y = jnp.mean(x, axis=(2, 3), keepdims=True)                       # (B,C,1,1)
    y = jnp.einsum("bcij,oc->boij", y, w1) + b1[None, :, None, None]
    y = jnp.maximum(y, 0.0)
    y = jnp.einsum("bcij,oc->boij", y, w2) + b2[None, :, None, None]
    y = jax.nn.sigmoid(y)
    return y * x


if __name__ == "__main__":
    B, C, reduction = 2, 8, 4
    Cr = C // reduction

    key = jax.random.PRNGKey(0)
    kx, kw1, kb1, kw2, kb2, kx2 = jax.random.split(key, 6)

    # kaiming_normal_ (fan_in, a=0): std = sqrt(2/fan_in); 1x1 conv fan_in = C_in
    w1 = jax.random.normal(kw1, (Cr, C), dtype=jnp.float32) * jnp.sqrt(2.0 / C)
    w2 = jax.random.normal(kw2, (C, Cr), dtype=jnp.float32) * jnp.sqrt(2.0 / Cr)
    # nn.Conv2d default bias init: U(-1/sqrt(fan_in), 1/sqrt(fan_in))
    b1 = jax.random.uniform(kb1, (Cr,), dtype=jnp.float32,
                            minval=-1.0 / jnp.sqrt(C), maxval=1.0 / jnp.sqrt(C))
    b2 = jax.random.uniform(kb2, (C,), dtype=jnp.float32,
                            minval=-1.0 / jnp.sqrt(Cr), maxval=1.0 / jnp.sqrt(Cr))

    # 1) fast path: single fused pass (slab-resident)
    x = jax.random.normal(kx, (B, C, 16, 16), dtype=jnp.float32)
    out = jax.block_until_ready(ca_layer_pallas(x, w1, b1, w2, b2))
    ref = jax.block_until_ready(ca_layer_ref(x, w1, b1, w2, b2))
    assert out.shape == x.shape
    assert jnp.allclose(out, ref, atol=1e-5, rtol=1e-5)

    # 2) fallback path: tiled two-pass with a non-dividing tile (masked tail)
    x2 = jax.random.normal(kx2, (B, C, 16, 20), dtype=jnp.float32)   # HW = 320
    out2 = jax.block_until_ready(ca_layer_pallas(x2, w1, b1, w2, b2, hw_tile=128))
    ref2 = jax.block_until_ready(ca_layer_ref(x2, w1, b1, w2, b2))
    assert out2.shape == x2.shape
    assert jnp.allclose(out2, ref2, atol=1e-5, rtol=1e-5)

    print("KERNEL_OK")
</pallas_src>

<mosaic_0001>
module attributes {stable_mosaic.version = 11 : i64} {
  func.func @_fused_kernel(%arg0: i32, %arg1: memref<1x8x256xf32, #tpu.memory_space<vmem>>, %arg2: memref<8x2xf32, #tpu.memory_space<vmem>>, %arg3: memref<1x2xf32, #tpu.memory_space<vmem>>, %arg4: memref<8x2xf32, #tpu.memory_space<vmem>>, %arg5: memref<8x1xf32, #tpu.memory_space<vmem>>, %arg6: memref<1x8x256xf32, #tpu.memory_space<vmem>>) attributes {dimension_semantics = [#tpu.dimension_semantics<parallel>], iteration_bounds = array<i64: 2>, scalar_prefetch = 0 : i64, scratch_operands = 0 : i64, tpu.core_type = #tpu.core_type<tc>, window_params = [{transform_indices = @transform_0, window_bounds = array<i64: 1, 8, 256>}, {pipeline_mode = #tpu.pipeline_mode<synchronous>, transform_indices = @transform_1, window_bounds = array<i64: 8, 2>}, {pipeline_mode = #tpu.pipeline_mode<synchronous>, transform_indices = @transform_2, window_bounds = array<i64: 1, 2>}, {pipeline_mode = #tpu.pipeline_mode<synchronous>, transform_indices = @transform_3, window_bounds = array<i64: 8, 2>}, {pipeline_mode = #tpu.pipeline_mode<synchronous>, transform_indices = @transform_4, window_bounds = array<i64: 8, 1>}, {transform_indices = @transform_5, window_bounds = array<i64: 1, 8, 256>}]} {
    %c0 = arith.constant 0 : index
    %c0_0 = arith.constant 0 : index
    %c0_1 = arith.constant 0 : index
    %0 = vector.load %arg1[%c0, %c0_0, %c0_1] : memref<1x8x256xf32, #tpu.memory_space<vmem>>, vector<1x8x256xf32>
    %1 = vector.shape_cast %0 : vector<1x8x256xf32> to vector<8x256xf32>
    %cst = arith.constant dense<0.000000e+00> : vector<8xf32>
    %2 = vector.multi_reduction <add>, %1, %cst [1] : vector<8x256xf32> to vector<8xf32>
    %3 = vector.shape_cast %2 : vector<8xf32> to vector<8x1xf32>
    %c0_2 = arith.constant 0 : index
    %c0_3 = arith.constant 0 : index
    %4 = vector.load %arg2[%c0_2, %c0_3] : memref<8x2xf32, #tpu.memory_space<vmem>>, vector<8x2xf32>
    %c0_4 = arith.constant 0 : index
    %c0_5 = arith.constant 0 : index
    %5 = vector.load %arg3[%c0_4, %c0_5] : memref<1x2xf32, #tpu.memory_space<vmem>>, vector<1x2xf32>
    %c0_6 = arith.constant 0 : index
    %c0_7 = arith.constant 0 : index
    %6 = vector.load %arg4[%c0_6, %c0_7] : memref<8x2xf32, #tpu.memory_space<vmem>>, vector<8x2xf32>
    %c0_8 = arith.constant 0 : index
    %c0_9 = arith.constant 0 : index
    %7 = vector.load %arg5[%c0_8, %c0_9] : memref<8x1xf32, #tpu.memory_space<vmem>>, vector<8x1xf32>
    %cst_10 = arith.constant 3.906250e-03 : f32
    %8 = vector.broadcast %cst_10 : f32 to vector<8x1xf32>
    %9 = arith.mulf %3, %8 : vector<8x1xf32>
    %10 = vector.broadcast %9 : vector<8x1xf32> to vector<8x2xf32>
    %11 = arith.mulf %4, %10 : vector<8x2xf32>
    %cst_11 = arith.constant dense<0.000000e+00> : vector<2xf32>
    %12 = vector.multi_reduction <add>, %11, %cst_11 [0] : vector<8x2xf32> to vector<2xf32>
    %13 = vector.shape_cast %12 : vector<2xf32> to vector<1x2xf32>
    %14 = arith.addf %13, %5 : vector<1x2xf32>
    %cst_12 = arith.constant 0.000000e+00 : f32
    %15 = vector.broadcast %cst_12 : f32 to vector<1x2xf32>
    %16 = arith.maximumf %14, %15 : vector<1x2xf32>
    %17 = vector.broadcast %16 : vector<1x2xf32> to vector<8x2xf32>
    %18 = arith.mulf %6, %17 : vector<8x2xf32>
    %cst_13 = arith.constant dense<0.000000e+00> : vector<8xf32>
    %19 = vector.multi_reduction <add>, %18, %cst_13 [1] : vector<8x2xf32> to vector<8xf32>
    %20 = vector.shape_cast %19 : vector<8xf32> to vector<8x1xf32>
    %21 = arith.addf %20, %7 : vector<8x1xf32>
    %22 = arith.negf %21 : vector<8x1xf32>
    %23 = math.exp %22 : vector<8x1xf32>
    %cst_14 = arith.constant 1.000000e+00 : f32
    %24 = vector.broadcast %cst_14 : f32 to vector<8x1xf32>
    %25 = arith.addf %24, %23 : vector<8x1xf32>
    %26 = arith.divf %24, %25 : vector<8x1xf32>
    %27 = vector.broadcast %26 : vector<8x1xf32> to vector<8x256xf32>
    %28 = arith.mulf %1, %27 : vector<8x256xf32>
    %c0_15 = arith.constant 0 : index
    %c0_16 = arith.constant 0 : index
    %c0_17 = arith.constant 0 : index
    %29 = vector.load %arg6[%c0_15, %c0_16, %c0_17] : memref<1x8x256xf32, #tpu.memory_space<vmem>>, vector<1x8x256xf32>
    %30 = vector.shape_cast %29 : vector<1x8x256xf32> to vector<8x256xf32>
    %31 = vector.shape_cast %28 : vector<8x256xf32> to vector<1x8x256xf32>
    tpu.vector_store %arg6[%c0_15, %c0_16, %c0_17], %31 {strides = array<i32>} : memref<1x8x256xf32, #tpu.memory_space<vmem>>, vector<1x8x256xf32>,
    return
  }
  func.func @transform_0(%arg0: i32) -> (i32, i32, i32) {
    %c0_i32 = arith.constant 0 : i32
    %c0_i32_0 = arith.constant 0 : i32
    %c0_i32_1 = arith.constant 0 : i32
    return %arg0, %c0_i32, %c0_i32_0 : i32, i32, i32
  }
  func.func @transform_1(%arg0: i32) -> (i32, i32) {
    %c0_i32 = arith.constant 0 : i32
    %c0_i32_0 = arith.constant 0 : i32
    %c0_i32_1 = arith.constant 0 : i32
    return %c0_i32, %c0_i32_0 : i32, i32
  }
  func.func @transform_2(%arg0: i32) -> (i32, i32) {
    %c0_i32 = arith.constant 0 : i32
    %c0_i32_0 = arith.constant 0 : i32
    %c0_i32_1 = arith.constant 0 : i32
    return %c0_i32, %c0_i32_0 : i32, i32
  }
  func.func @transform_3(%arg0: i32) -> (i32, i32) {
    %c0_i32 = arith.constant 0 : i32
    %c0_i32_0 = arith.constant 0 : i32
    %c0_i32_1 = arith.constant 0 : i32
    return %c0_i32, %c0_i32_0 : i32, i32
  }
  func.func @transform_4(%arg0: i32) -> (i32, i32) {
    %c0_i32 = arith.constant 0 : i32
    %c0_i32_0 = arith.constant 0 : i32
    %c0_i32_1 = arith.constant 0 : i32
    return %c0_i32, %c0_i32_0 : i32, i32
  }
  func.func @transform_5(%arg0: i32) -> (i32, i32, i32) {
    %c0_i32 = arith.constant 0 : i32
    %c0_i32_0 = arith.constant 0 : i32
    %c0_i32_1 = arith.constant 0 : i32
    return %arg0, %c0_i32, %c0_i32_0 : i32, i32, i32
  }
}

</mosaic_0001>

<llo_original>
// kernel: tpu_custom_call.1
$region0: #{tpu_custom_call.1}
  #allocation0 [shape = 'u32[]', space=smem, size = 0x4, offset = 0x4, fixed_abs, tag = 'smem constant byte address 0x4 - core index']
  #allocation1 [shape = 'u32[144,128]{1,0:T(1,128)}', space=vmem, size = 0x12000, scoped, tag = 'internal scratch']
  %s0 = inlined_call_operand.hbm [shape: f32[2,8,256], index: 0, kind: input, shape index: {}]
  %s1 = inlined_call_operand.vmem [shape: f32[8,2], index: 1, kind: input, shape index: {}]
  %s2 = inlined_call_operand.vmem [shape: f32[1,2], index: 2, kind: input, shape index: {}]
  %s3 = inlined_call_operand.vmem [shape: f32[8,2], index: 3, kind: input, shape index: {}]
  %s4 = inlined_call_operand.vmem [shape: f32[8,1], index: 4, kind: input, shape index: {}]
  %s5 = inlined_call_operand.hbm [shape: f32[2,8,256], index: 5, kind: output, shape index: {}]
  %s6 = sld [smem:[#allocation0]]
  $region57: #{tpu_custom_call.1} parent=0
    _
  %s8 = ssub.s32 1, %s6
  %s9 = scalar_select 0, %s8, %s6
  $region1: #{tpu_custom_call.1} parent=0
    #allocation2 [shape = 'u8[16384]{0}', space=vmem, size = 0x4000, scoped, tag = 'input window, operand 0']
    #allocation3 [shape = 's32[2]{0}', space=sflag, size = 0x8, scoped, tag = 'scoped memory for tpu_custom_call.1']
    #allocation4 [shape = 's32[2]{0}', space=sflag, size = 0x8, scoped, tag = 'scoped memory for tpu_custom_call.1']
    #allocation5 [shape = 'u8[16384]{0}', space=vmem, size = 0x4000, scoped, tag = 'output window, operand 0']
    %10 = vsyncpa [#allocation3], 0
    %s11 = scalar_lea.sflag [#allocation3], 1
    %12 = vsyncpa %s11, 0
    %13 = vsyncpa [#allocation4], 0
    %s14 = scalar_lea.sflag [#allocation4], 1
    %15 = vsyncpa %s14, 0
    loop: start=0, step=1, limit=4
    $region2: #{tpu_custom_call.1} parent=1 // loop_pre_header
      _
    $region3: #{tpu_custom_call.1} parent=1 // loop_header
      %s17 = sphi 0, %s21
      %p18 = scmp.ge.s32.totalorder %s17, 4
      %s27 = sphi 0, %s29
      %s30 = sphi 0, %s27
      %s31 = sphi 0, %s30
      %s47 = sphi 0, %s31
      %s51 = sphi 0, %s51
      %s53 = sphi 0, %s51
      %s54 = sphi 0, %s53
      %s68 = sphi 0, %s54
      %s72 = sphi 0, %s72
      %s74 = sphi 0, %s72
      %s75 = sphi 0, %s74
      %s89 = sphi 0, %s75
      %s93 = sphi 0, %s93
      %s95 = sphi 0, %s93
      %s96 = sphi 0, %s95
      %s110 = sphi 0, %s96
      %s114 = sphi 0, %s114
      %s116 = sphi 0, %s114
      %s117 = sphi 0, %s116
      %s131 = sphi 0, %s117
      %s137 = sphi 0, %s139
      %s140 = sphi 0, %s137
      %s141 = sphi 0, %s140
      %s157 = sphi 0, %s141
    $region4: #{tpu_custom_call.1} parent=1 // loop_header_branch
      %20 = sbr.rel (%p18) target = $region8
    $region5: #{tpu_custom_call.1} parent=1 // loop_body
      %s22 = ssub.s32 %s17, 1
      %s23 = ssub.s32 %s17, 2
      %s24 = sadd.s32 %s17, 1
      %s25 = ssub.s32 %s17, %s24
      %p26 = scmp.eq.s32.totalorder %s25, 0
      %s28 = sadd.s32 %s27, 1
      %s29 = scalar_select %p26, %s27, %s28
      %p32 = pneg %p26
      %p33 = scmp.eq.s32.totalorder %s17, 1
      %p34 = por %p32, %p33
      %p35 = scmp.ne.s32.totalorder %s27, %s30
      %p36 = scmp.eq.s32.totalorder %s17, 0
      %p37 = por %p35, %p36
      %p38 = scmp.ne.s32.totalorder %s27, %s30
      %p39 = scmp.eq.s32.totalorder %s22, 1
      %p40 = por %p38, %p39
      %p41 = scmp.ne.s32.totalorder %s30, %s31
      %p42 = scmp.eq.s32.totalorder %s22, 0
      %p43 = por %p41, %p42
      %p44 = scmp.ne.s32.totalorder %s30, %s31
      %p45 = scmp.eq.s32.totalorder %s23, 1
      %p46 = por %p44, %p45
      %p48 = scmp.ne.s32.totalorder %s31, %s47
      %p49 = scmp.eq.s32.totalorder %s23, 0
      %p50 = por %p48, %p49
      %s52 = sadd.s32 %s51, 1
      %p55 = scmp.eq.s32.totalorder %s17, 1
      %p56 = scmp.ne.s32.totalorder %s51, %s53
      %p57 = scmp.eq.s32.totalorder %s17, 0
      %p58 = por %p56, %p57
      %p59 = scmp.ne.s32.totalorder %s51, %s53
      %p60 = scmp.eq.s32.totalorder %s22, 1
      %p61 = por %p59, %p60
      %p62 = scmp.ne.s32.totalorder %s53, %s54
      %p63 = scmp.eq.s32.totalorder %s22, 0
      %p64 = por %p62, %p63
      %p65 = scmp.ne.s32.totalorder %s53, %s54
      %p66 = scmp.eq.s32.totalorder %s23, 1
      %p67 = por %p65, %p66
      %p69 = scmp.ne.s32.totalorder %s54, %s68
      %p70 = scmp.eq.s32.totalorder %s23, 0
      %p71 = por %p69, %p70
      %s73 = sadd.s32 %s72, 1
      %p76 = scmp.eq.s32.totalorder %s17, 1
      %p77 = scmp.ne.s32.totalorder %s72, %s74
      %p78 = scmp.eq.s32.totalorder %s17, 0
      %p79 = por %p77, %p78
      %p80 = scmp.ne.s32.totalorder %s72, %s74
      %p81 = scmp.eq.s32.totalorder %s22, 1
      %p82 = por %p80, %p81
      %p83 = scmp.ne.s32.totalorder %s74, %s75
      %p84 = scmp.eq.s32.totalorder %s22, 0
      %p85 = por %p83, %p84
      %p86 = scmp.ne.s32.totalorder %s74, %s75
      %p87 = scmp.eq.s32.totalorder %s23, 1
      %p88 = por %p86, %p87
      %p90 = scmp.ne.s32.totalorder %s75, %s89
      %p91 = scmp.eq.s32.totalorder %s23, 0
      %p92 = por %p90, %p91
      %s94 = sadd.s32 %s93, 1
      %p97 = scmp.eq.s32.totalorder %s17, 1
      %p98 = scmp.ne.s32.totalorder %s93, %s95
      %p99 = scmp.eq.s32.totalorder %s17, 0
      %p100 = por %p98, %p99
      %p101 = scmp.ne.s32.totalorder %s93, %s95
      %p102 = scmp.eq.s32.totalorder %s22, 1
      %p103 = por %p101, %p102
      %p104 = scmp.ne.s32.totalorder %s95, %s96
      %p105 = scmp.eq.s32.totalorder %s22, 0
      %p106 = por %p104, %p105
      %p107 = scmp.ne.s32.totalorder %s95, %s96
      %p108 = scmp.eq.s32.totalorder %s23, 1
      %p109 = por %p107, %p108
      %p111 = scmp.ne.s32.totalorder %s96, %s110
      %p112 = scmp.eq.s32.totalorder %s23, 0
      %p113 = por %p111, %p112
      %s115 = sadd.s32 %s114, 1
      %p118 = scmp.eq.s32.totalorder %s17, 1
      %p119 = scmp.ne.s32.totalorder %s114, %s116
      %p120 = scmp.eq.s32.totalorder %s17, 0
      %p121 = por %p119, %p120
      %p122 = scmp.ne.s32.totalorder %s114, %s116
      %p123 = scmp.eq.s32.totalorder %s22, 1
      %p124 = por %p122, %p123
      %p125 = scmp.ne.s32.totalorder %s116, %s117
      %p126 = scmp.eq.s32.totalorder %s22, 0
      %p127 = por %p125, %p126
      %p128 = scmp.ne.s32.totalorder %s116, %s117
      %p129 = scmp.eq.s32.totalorder %s23, 1
      %p130 = por %p128, %p129
      %p132 = scmp.ne.s32.totalorder %s117, %s131
      %p133 = scmp.eq.s32.totalorder %s23, 0
      %p134 = por %p132, %p133
      %s135 = ssub.s32 %s17, %s24
      %p136 = scmp.eq.s32.totalorder %s135, 0
      %s138 = sadd.s32 %s137, 1
      %s139 = scalar_select %p136, %s137, %s138
      %p142 = pneg %p136
      %p143 = scmp.eq.s32.totalorder %s17, 1
      %p144 = por %p142, %p143
      %p145 = scmp.ne.s32.totalorder %s137, %s140
      %p146 = scmp.eq.s32.totalorder %s17, 0
      %p147 = por %p145, %p146
      %p148 = scmp.ne.s32.totalorder %s137, %s140
      %p149 = scmp.eq.s32.totalorder %s22, 1
      %p150 = por %p148, %p149
      %p151 = scmp.ne.s32.totalorder %s140, %s141
      %p152 = scmp.eq.s32.totalorder %s22, 0
      %p153 = por %p151, %p152
      %p154 = scmp.ne.s32.totalorder %s140, %s141
      %p155 = scmp.eq.s32.totalorder %s23, 1
      %p156 = por %p154, %p155
      %p158 = scmp.ne.s32.totalorder %s141, %s157
      %p159 = scmp.eq.s32.totalorder %s23, 0
      %p160 = por %p158, %p159
      %p161 = scmp.le.s32.totalorder 1, %s17
      %p162 = scmp.lt.s32.totalorder %s17, 3
      %p163 = pnand %p161, %p162
      %p164 = pneg %p163
      // Predicated region
      $region9: #{tpu_custom_call.1} parent=5 // pred_check
        _
      $region10: #{tpu_custom_call.1} parent=5 // pred_check_branch
        %166 = sbr.rel (%p163) target = $region12
      $region11: #{tpu_custom_call.1} parent=5 // pred_region
        %s167 = ssub.s32 %s17, 1
        // Predicated region
        $region13: #{tpu_custom_call.1} parent=11 // pred_check
          %p168 = pneg %p64
        $region14: #{tpu_custom_call.1} parent=11 // pred_check_branch
          %170 = sbr.rel (%p168) target = $region16
        $region15: #{tpu_custom_call.1} parent=11 // pred_region
          _
        $region16: #{tpu_custom_call.1} parent=11 // pred_fallthru
          _
        // Predicated region
        $region17: #{tpu_custom_call.1} parent=11 // pred_check
          %p171 = pneg %p85
        $region18: #{tpu_custom_call.1} parent=11 // pred_check_branch
          %173 = sbr.rel (%p171) target = $region20
        $region19: #{tpu_custom_call.1} parent=11 // pred_region
          _
        $region20: #{tpu_custom_call.1} parent=11 // pred_fallthru
          _
        // Predicated region
        $region21: #{tpu_custom_call.1} parent=11 // pred_check
          %p174 = pneg %p106
        $region22: #{tpu_custom_call.1} parent=11 // pred_check_branch
          %176 = sbr.rel (%p174) target = $region24
        $region23: #{tpu_custom_call.1} parent=11 // pred_region
          _
        $region24: #{tpu_custom_call.1} parent=11 // pred_fallthru
          _
        // Predicated region
        $region25: #{tpu_custom_call.1} parent=11 // pred_check
          %p177 = pneg %p127
        $region26: #{tpu_custom_call.1} parent=11 // pred_check_branch
          %179 = sbr.rel (%p177) target = $region28
        $region27: #{tpu_custom_call.1} parent=11 // pred_region
          _
        $region28: #{tpu_custom_call.1} parent=11 // pred_fallthru
          _
      $region12: #{tpu_custom_call.1} parent=5 // pred_fallthru
        _
      %p180 = scmp.lt.s32.totalorder %s17, 2
      // Predicated region
      $region29: #{tpu_custom_call.1} parent=5 // pred_check
        %p181 = pneg %p180
      $region30: #{tpu_custom_call.1} parent=5 // pred_check_branch
        %183 = sbr.rel (%p181) target = $region32
      $region31: #{tpu_custom_call.1} parent=5 // pred_region
        // Predicated region
        $region33: #{tpu_custom_call.1} parent=31 // pred_check
          %p184 = pneg %p37
        $region34: #{tpu_custom_call.1} parent=31 // pred_check_branch
          %186 = sbr.rel (%p184) target = $region36
        $region35: #{tpu_custom_call.1} parent=31 // pred_region
          %s187 = sand.u32 %s27, 1
          %s188 = scalar_lea.sflag [#allocation3], %s187
          %s189 = sand.u32 %s27, 1
          %s190 = smul.addr %s189, 16
          %s191 = scalar_lea.vmem [#allocation2], %s190
          %s193 = ssub.s32 256, 256
          %194 = vsyncadd %s188, %s193
          %s195 = smul.addr %s17, 2
          %s196 = smul.addr %s195, 128
          %s197 = scalar_lea.hbm %s0, %s196
          %s199 = sshll.u32 %s191, 4
          %s200 = int_to_ptr.vmem [resolvable:$true] %s199
          %202 = dma.hbm_to_vmem [thread:$0]  %s197, 256, %s200, %s188
        $region36: #{tpu_custom_call.1} parent=31 // pred_fallthru
          _
      $region32: #{tpu_custom_call.1} parent=5 // pred_fallthru
        _
      %p203 = scmp.le.s32.totalorder 1, %s17
      %p204 = scmp.lt.s32.totalorder %s17, 3
      %p205 = pnand %p203, %p204
      %p206 = pneg %p205
      // Predicated region
      $region37: #{tpu_custom_call.1} parent=5 // pred_check
        _
      $region38: #{tpu_custom_call.1} parent=5 // pred_check_branch
        %208 = sbr.rel (%p205) target = $region40
      $region39: #{tpu_custom_call.1} parent=5 // pred_region
        %s209 = ssub.s32 %s17, 1
        %s210 = sand.u32 %s30, 1
        %s211 = scalar_lea.sflag [#allocation3], %s210
        %s212 = sand.u32 %s30, 1
        %s213 = smul.addr %s212, 16
        %s214 = scalar_lea.vmem [#allocation2], %s213
        // Predicated region
        $region41: #{tpu_custom_call.1} parent=39 // pred_check
          %p215 = pneg %p43
        $region42: #{tpu_custom_call.1} parent=39 // pred_check_branch
          %217 = sbr.rel (%p215) target = $region44
        $region43: #{tpu_custom_call.1} parent=39 // pred_region
          %218 = dma.done %s211, 256
        $region44: #{tpu_custom_call.1} parent=39 // pred_fallthru
          _
        %s219 = sand.u32 %s30, 1
        %s220 = scalar_lea.sflag [#allocation3], %s219
        %s221 = sand.u32 %s30, 1
        %s222 = smul.addr %s221, 16
        %s223 = scalar_lea.vmem [#allocation2], %s222
        %p224 = pneg %p43
        %p225 = pneg %p40
        %p226 = pneg %p64
        %p227 = pneg %p61
        %p228 = pneg %p85
        %p229 = pneg %p82
        %p230 = pneg %p106
        %p231 = pneg %p103
        %p232 = pneg %p127
        %p233 = pneg %p124
        %p234 = pneg %p153
        %p235 = pneg %p150
        %s236 = sand.u32 %s140, 1
        %s237 = scalar_lea.sflag [#allocation4], %s236
        %s238 = sand.u32 %s140, 1
        %s239 = smul.addr %s238, 16
        %s240 = scalar_lea.vmem [#allocation5], %s239
        %v241 = vld [vmem:[%s214] sm:$0xff]
        %v242 = vld [vmem:[%s214 + $0x8] sm:$0xff]
        %v243 = vadd.f32 %v241, %v242
        %244 = vadd.xlane.f32.xlu0 %v243
        %v245 = vpop.xlane.xlu0 %244
        %v246 = vld [vmem:[%s1] sm:$0xff]
        %v247 = vld [vmem:[%s2] sm:$0x1]
        %v248 = vld [vmem:[%s3] sm:$0xff]
        %v249 = vld [vmem:[%s4] sm:$0xff]
        %v250 = vmul.f32 %v245, 0.00390625
        %v251 = vmul.f32 %v246, %v250
        %vm252 = vcmask 15360
        %v253 = vsel %vm252, %v251, 0.0
        %v254 = vrot.slane %v253, 4
        %v255 = vadd.f32 %v253, %v254
        %v256 = vrot.slane %v255, 2
        %v257 = vadd.f32 %v255, %v256
        %v258 = vrot.slane %v257, 1
        %v259 = vadd.f32 %v257, %v258
        %v260 = vadd.f32 %v259, %v247
        %v261 = vmax.f32 %v260, 0.0
        %v262 = vlaneseq
        %v263 = vshrl.u32 %v262, 7
        %v264 = vsub.s32 0, %v263
        %v265 = vrot.slane %v261, %v264
        %v266 = vmul.f32 %v248, %v265
        %v267 = vsel %vm252, %v266, 0.0
        %268 = vadd.xlane.f32.xlu0 %v267
        %v269 = vpop.xlane.xlu0 %268
        %v270 = vadd.f32 %v269, %v249
        %v271 = vxor.u32 %v270, 2147483648
        %v272 = vmul.f32 %v271, 1.442695
        %v273 = vpow.pop %v272
        %v274 = vadd.f32 %v273, 1.0
        %v275 = vrcp.pop %v274
        %v276 = vmul.f32 1.0, %v275
        %278 = vset.pattern.permute.xlu0 0
        %279 = vperm.xlu0 %278, %v276
        %v280 = vpop.permute.xlu0 %279
        %v282 = vmul.f32 %v241, %v280
        %v283 = vmul.f32 %v242, %v280
        %284 = vst [vmem:[%s240] sm:$0xff] %v282
        %285 = vst [vmem:[%s240 + $0x8] sm:$0xff] %v283
        %s286 = sand.u32 %s140, 1
        %s287 = scalar_lea.sflag [#allocation4], %s286
        %s288 = sand.u32 %s140, 1
        %s289 = smul.addr %s288, 16
        %s290 = scalar_lea.vmem [#allocation5], %s289
        // Predicated region
        $region45: #{tpu_custom_call.1} parent=39 // pred_check
          %p291 = pneg %p150
        $region46: #{tpu_custom_call.1} parent=39 // pred_check_branch
          %293 = sbr.rel (%p291) target = $region48
        $region47: #{tpu_custom_call.1} parent=39 // pred_region
          %s295 = ssub.s32 256, 256
          %296 = vsyncadd %s287, %s295
          %s297 = smul.addr %s22, 2
          %s298 = smul.addr %s297, 128
          %s299 = scalar_lea.hbm %s5, %s298
          %s301 = sshll.u32 %s290, 4
          %s302 = int_to_ptr.vmem [resolvable:$true] %s301
          %304 = dma.vmem_to_hbm [thread:$0]  %s302, 256, %s299, %s287
        $region48: #{tpu_custom_call.1} parent=39 // pred_fallthru
          _
      $region40: #{tpu_custom_call.1} parent=5 // pred_fallthru
        _
      %p305 = scmp.le.s32.totalorder 2, %s17
      // Predicated region
      $region49: #{tpu_custom_call.1} parent=5 // pred_check
        %p306 = pneg %p305
      $region50: #{tpu_custom_call.1} parent=5 // pred_check_branch
        %308 = sbr.rel (%p306) target = $region52
      $region51: #{tpu_custom_call.1} parent=5 // pred_region
        %s309 = ssub.s32 %s17, 2
        // Predicated region
        $region53: #{tpu_custom_call.1} parent=51 // pred_check
          %p310 = pneg %p156
        $region54: #{tpu_custom_call.1} parent=51 // pred_check_branch
          %312 = sbr.rel (%p310) target = $region56
        $region55: #{tpu_custom_call.1} parent=51 // pred_region
          %s313 = sand.u32 %s141, 1
          %s314 = scalar_lea.sflag [#allocation4], %s313
          %s315 = sand.u32 %s141, 1
          %s316 = smul.addr %s315, 16
          %s317 = scalar_lea.vmem [#allocation5], %s316
          %318 = dma.done %s314, 256
        $region56: #{tpu_custom_call.1} parent=51 // pred_fallthru
          _
      $region52: #{tpu_custom_call.1} parent=5 // pred_fallthru
        _
    $region6: #{tpu_custom_call.1} parent=1 // loop_footer
      %s21 = sadd.s32 1, %s17
    $region7: #{tpu_custom_call.1} parent=1 // loop_footer_branch
      %16 = sbr.rel target = $region3
    $region8: #{tpu_custom_call.1} parent=1 // loop_exit
      _
    %319 = vsyncpa [#allocation3], 1
    %s320 = scalar_lea.sflag [#allocation3], 1
    %321 = vsyncpa %s320, 1
    %322 = vsyncpa [#allocation4], 1
    %s323 = scalar_lea.sflag [#allocation4], 1
    %324 = vsyncpa %s323, 1

</llo_original>
